<compile_context>
chip_gen: v5e
topology: v5e:2x2
jax: 0.10.0
libtpu: 0.0.40
codegen_flags: <defaults>
</compile_context>

<pallas_src>
import math

import jax
import jax.numpy as jnp
from jax.experimental import pallas as pl
from jax.experimental.pallas import tpu as pltpu


def _dma_copy_kernel(x_hbm, o_hbm, sem):
    # Single whole-array HBM -> HBM DMA.  The DMA engine streams this at HBM
    # roofline; there is no compute to overlap, so start+wait is optimal.
    cp = pltpu.make_async_copy(x_hbm, o_hbm, sem)
    cp.start()
    cp.wait()


def _pallas_physical_copy(x):
    """Materialize a fresh contiguous copy of `x` via one HBM->HBM DMA."""
    itemsize = jnp.dtype(x.dtype).itemsize
    nbytes = math.prod(x.shape) * itemsize
    return pl.pallas_call(
        _dma_copy_kernel,
        out_shape=jax.ShapeDtypeStruct(x.shape, x.dtype),
        in_specs=[pl.BlockSpec(memory_space=pl.ANY)],
        out_specs=pl.BlockSpec(memory_space=pl.ANY),
        scratch_shapes=[pltpu.SemaphoreType.DMA],
        cost_estimate=pl.CostEstimate(
            flops=0, transcendentals=0, bytes_accessed=2 * nbytes),
    )(x)


class Reshape:
    """JAX/Pallas equivalent of the PyTorch Reshape module."""

    def __init__(self, *args):
        self.shape = tuple(args)

    def __call__(self, x):
        b = x.shape[0]
        n_in = math.prod(x.shape[1:]) if x.ndim > 1 else 1

        # Resolve a possible -1 in the target shape (torch .view allows it).
        shape = list(self.shape)
        if -1 in shape:
            idx = shape.index(-1)
            known = math.prod(d for d in shape if d != -1)
            assert known > 0 and n_in % known == 0, "reshape size mismatch (-1)"
            shape[idx] = n_in // known
        n_out = math.prod(shape) if shape else 1
        assert n_out == n_in, "reshape size mismatch"

        # Metadata-only reshape (free), then a single-DMA physical copy so the
        # caller gets a fresh contiguous buffer.
        y = x.reshape((b,) + tuple(shape))
        return _pallas_physical_copy(y)


if __name__ == "__main__":
    key = jax.random.PRNGKey(0)
    # Small NCHW input: batch=2, channels=4, spatial=16x16 -> 1024 feats/row.
    x = jax.random.normal(key, (2, 4, 16, 16), dtype=jnp.float32)

    # Reshape the (4, 16, 16) trailing dims into (16, 64), keeping batch.
    mod = Reshape(16, 64)
    y = mod(x)
    y = jax.block_until_ready(y)

    # Correctness check against plain JAX reshape (== torch .view semantics).
    ref = x.reshape((x.shape[0], 16, 64))
    assert y.shape == (2, 16, 64), y.shape
    assert y.dtype == x.dtype
    assert bool(jnp.array_equal(y, ref))

    # Also exercise the -1 path once.
    y2 = Reshape(-1, 64)(x)
    y2 = jax.block_until_ready(y2)
    assert y2.shape == (2, 16, 64)
    assert bool(jnp.array_equal(y2, ref))

    print("KERNEL_OK")
</pallas_src>

<mosaic_0001>
module attributes {stable_mosaic.version = 11 : i64} {
  func.func @_dma_copy_kernel(%arg0: memref<2x16x64xf32, #tpu.memory_space<any>>, %arg1: memref<2x16x64xf32, #tpu.memory_space<any>>, %arg2: memref<!tpu.dma_semaphore, #tpu.memory_space<semaphore_mem>>) attributes {dimension_semantics = [], scalar_prefetch = 0 : i64, scratch_operands = 1 : i64, tpu.core_type = #tpu.core_type<tc>} {
    tpu.enqueue_dma source(%arg0 : memref<2x16x64xf32, #tpu.memory_space<any>>) target(%arg1 : memref<2x16x64xf32, #tpu.memory_space<any>>) target_semaphore(%arg2 : memref<!tpu.dma_semaphore, #tpu.memory_space<semaphore_mem>>)
    tpu.wait_dma2 semaphore(%arg2 : memref<!tpu.dma_semaphore, #tpu.memory_space<semaphore_mem>>) src(%arg0 : memref<2x16x64xf32, #tpu.memory_space<any>>) dst(%arg1 : memref<2x16x64xf32, #tpu.memory_space<any>>)
    return
  }
}

</mosaic_0001>

<llo_original>
// kernel: tpu_custom_call.1
$region0: #{tpu_custom_call.1}
  #allocation0 [shape = 'u32[]', space=smem, size = 0x4, offset = 0x4, fixed_abs, tag = 'smem constant byte address 0x4 - core index']
  #allocation1 [shape = 'u32[72,128]{1,0:T(1,128)}', space=vmem, size = 0x9000, scoped, tag = 'internal scratch']
  #allocation2 [shape = 's32[1]{0}', space=sflag, size = 0x4, scoped, tag = 'scratch operand']
  #allocation3 [shape = 's32[]', space=sflag, size = 0x4, offset = 0, fixed_abs, tag = 'sflag constant byte address 0x0 - dummy sync flag']
  #allocation4 [shape = 'u32[0]{0}', space=smem, size = 0, offset = 0, fixed_abs, tag = 'smem constant byte address 0x0 - null']
  %s0 = inlined_call_operand.hbm [shape: f32[2,16,64], index: 0, kind: input, shape index: {}]
  %s1 = inlined_call_operand.hbm [shape: f32[2,16,64], index: 1, kind: output, shape index: {}]
  %s2 = sld [smem:[#allocation0]]
  $region2: #{tpu_custom_call.1} parent=0
    _
  %s4 = ssub.s32 1, %s2
  %s5 = scalar_select 0, %s4, %s2
  %s7 = sshll.u32 1, 14
  %s8 = sxor.u32 4294967295, %s7
  %s10 = sshll.u32 %s0, 4
  %s11 = int_to_ptr.hbm [resolvable:$true] %s10
  %s12 = sshll.u32 %s1, 4
  %s13 = int_to_ptr.hbm [resolvable:$true] %s12
  %16 = dma.general %s11, 512, %s13, [#allocation2], [#allocation3], [#allocation4], 0, 0
  %s17 = smul.u32 2, 16
  %s18 = smul.u32 %s17, 1
  %s19 = sshll.u32 %s18, 4
  %20 = dma.done [#allocation2], %s19
  %21 = vsyncmov [#allocation2]
  %s22 = vpop.sfrf %21
  %p23 = scmp.eq.s32.totalorder %s22, 0
  %p24 = pneg %p23
  %26 = shalt.err (%p24)

</llo_original>
